<compile_context>
chip_gen: v7x
topology: tpu7x:2x2x1
jax: 0.10.0
libtpu: 0.0.40
codegen_flags: <defaults>
</compile_context>

<pallas_src>
import functools

import jax
import jax.numpy as jnp
from jax import lax
from jax.experimental import pallas as pl
from jax.experimental.pallas import tpu as pltpu


# --------------------------------------------------------------------------- kernel

def attention_kernel(enc_ref, dec_ref, wet_ref, wdt_ref, wf_ref, bsum_ref,
                     awe_ref, alpha_ref, *, num_pixels):
    # enc_ref:  (TB, Pp, E)  MXU dtype     dec_ref:  (TB, D)  MXU dtype
    # wet_ref:  (E, A)  = W_enc^T          wdt_ref:  (D, A)  = W_dec^T
    # wf_ref:   (1, A)  f32                bsum_ref: (1, A)  f32  (= b_enc + b_dec)
    # awe_ref:  (TB, E)                    alpha_ref:(TB, Pp)
    TB, Pp, E = enc_ref.shape
    A = wet_ref.shape[1]

    enc = enc_ref[...]                                   # (TB, Pp, E)
    dec = dec_ref[...]                                   # (TB, D)

    # att_1 = encoder_att(encoder_out): one big (TB*Pp, E) x (E, A) MXU matmul.
    att1 = jnp.dot(enc.reshape(TB * Pp, E), wet_ref[...],
                   preferred_element_type=jnp.float32)    # (TB*Pp, A) f32
    # att_2 = decoder_att(decoder_hidden): (TB, D) x (D, A).
    att2 = jnp.dot(dec, wdt_ref[...],
                   preferred_element_type=jnp.float32)    # (TB, A) f32

    # relu(att_1 + att_2.unsqueeze(1)), both Linear biases folded into one vector.
    hidden = att2 + bsum_ref[...]                         # (TB, A)
    att = jnp.maximum(att1.reshape(TB, Pp, A) + hidden[:, None, :], 0.0)  # (TB, Pp, A)

    # full_att(att).squeeze(2): contraction over A on the VPU (multiply + lane
    # reduce). b_full is a uniform softmax shift and is dropped (exactly cancels).
    scores = jnp.sum(att * wf_ref[...], axis=-1)          # (TB, Pp) f32

    # Mask padded pixels so no attention mass leaks into the padding.
    if num_pixels != Pp:
        pix = lax.broadcasted_iota(jnp.int32, (TB, Pp), 1)
        scores = jnp.where(pix < num_pixels, scores, -jnp.inf)

    # Softmax over the pixel axis, kept in f32; denom reciprocal on the EUP.
    m = jnp.max(scores, axis=-1, keepdims=True)
    e = jnp.exp(scores - m)
    denom = jnp.sum(e, axis=-1, keepdims=True)
    alpha = e * pl.reciprocal(denom, approx=True)         # (TB, Pp) f32

    # attention_weight_encoding = (encoder_out * alpha.unsqueeze(2)).sum(dim=1),
    # as a batched (1, Pp) x (Pp, E) MXU matmul with f32 accumulation.
    alpha_mm = alpha[:, None, :].astype(enc.dtype)         # (TB, 1, Pp)
    awe = jnp.einsum('bqp,bpe->bqe', alpha_mm, enc,
                     preferred_element_type=jnp.float32)[:, 0, :]   # (TB, E) f32

    awe_ref[...] = awe.astype(awe_ref.dtype)
    alpha_ref[...] = alpha.astype(alpha_ref.dtype)


# ------------------------------------------------------------------- sizing helpers

def _round_up(x, m):
    return (x + m - 1) // m * m


def _vmem_capacity_bytes():
    """Physical VMEM per core; narrow-guarded query with a conservative fallback
    (64 MiB = v7x, the smallest across supported generations)."""
    get_info = getattr(pltpu, "get_tpu_info", None)
    if get_info is not None:
        try:
            info = get_info()
            for name in ("vmem_capacity_bytes", "vmem_size_bytes", "vmem_bytes"):
                cap = getattr(info, name, None)
                if cap:
                    return int(cap)
        except Exception:  # pragma: no cover - capability query only
            pass
    return 64 * 1024 * 1024


def _vmem_budget_bytes():
    cap = _vmem_capacity_bytes()
    # Leave headroom for compiler scratch / semaphores:
    # ~48 MiB on v7x (64 MiB VMEM), ~96 MiB on v5e/v6e (128 MiB VMEM).
    return min(cap - (16 << 20), int(0.75 * cap)), cap


def _working_set_bytes(tb, p, e, d, a, mxu_itemsize, out_itemsize, single_buf_weights):
    wbuf = 1 if single_buf_weights else 2
    enc = 2 * tb * p * e * mxu_itemsize                          # double-buffered encoder block
    dec = 2 * tb * d * mxu_itemsize                              # double-buffered decoder block
    wts = wbuf * ((e * a + d * a) * mxu_itemsize + 2 * a * 4)    # W_enc^T, W_dec^T, w_full, b_sum
    tmp = 2 * tb * p * a * 4                                     # att1 + relu(att) f32 temps
    out = 2 * tb * (e + p) * out_itemsize                        # double-buffered awe + alpha
    return enc + dec + wts + tmp + out


def _pick_batch_tile(B, p, e, d, a, mxu_itemsize, out_itemsize,
                     single_buf_weights, budget_bytes):
    """Largest useful batch tile such that:
       - TB divides B and (TB == B or TB % 8 == 0)  -> dense, unmasked stores,
       - the full working set fits the VMEM budget,
       preferring the smallest TB with TB*P >= 256 (fills the MXU M dimension)
       that still leaves >= 2 grid steps (megacore load balance on v7x)."""
    def fits(tb):
        return _working_set_bytes(tb, p, e, d, a, mxu_itemsize, out_itemsize,
                                  single_buf_weights) <= budget_bytes

    cands = [t for t in range(1, B + 1)
             if B % t == 0 and (t == B or t % 8 == 0) and fits(t)]
    if not cands:
        return 1
    target = max(1, -(-256 // p))                      # ceil(256 / P)
    pref = [t for t in cands if t >= target and B // t >= 2]
    if pref:
        return min(pref)
    good = [t for t in cands if t >= target]
    if good:
        return min(good)
    return max(cands)


@functools.lru_cache(maxsize=1)
def _single_buffered_weights_supported():
    """True iff pl.BlockSpec(..., pipeline_mode=pl.Buffered(1)) exists AND a tiny
    probe kernel using it compiles on the current backend. The probe is the ONLY
    place a broad except is allowed: a failure here just means "fall back to
    default double buffering" and can never hide an error in the real kernel.
    (Use pl.lower_as_mlir on the attention call to confirm single-buffering.)"""
    if not hasattr(pl, "Buffered"):
        return False
    try:
        const_spec = pl.BlockSpec((8, 128), lambda i: (0, 0),
                                  pipeline_mode=pl.Buffered(1))
    except TypeError:
        return False

    def _probe(w_ref, o_ref):
        o_ref[...] = w_ref[...] + 1.0

    probe = pl.pallas_call(
        _probe,
        out_shape=jax.ShapeDtypeStruct((8, 128), jnp.float32),
        grid_spec=pltpu.PrefetchScalarGridSpec(
            num_scalar_prefetch=0, grid=(2,),
            in_specs=[const_spec],
            out_specs=pl.BlockSpec((8, 128), lambda i: (0, 0))),
    )
    try:
        jax.jit(probe).lower(jnp.zeros((8, 128), jnp.float32)).compile()
    except Exception:  # noqa: BLE001 - capability probe only, see docstring
        return False
    return True


# ------------------------------------------------------------------------- wrapper

def attention_forward(encoder_out, decoder_hidden, params, *,
                      mxu_dtype=jnp.bfloat16, batch_tile=None,
                      vmem_limit_bytes=None):
    """encoder_out: (B, P, E), decoder_hidden: (B, D).
    Returns (attention_weight_encoding (B, E), alpha (B, P)).

    mxu_dtype: dtype of the MXU operands (encoder_out, decoder_hidden, W_enc, W_dec,
    alpha-for-awe). Defaults to bfloat16 on every generation (bf16-native MXU, half
    the encoder DMA); accumulation, biases, ReLU and the softmax stay float32.
    Pass jnp.float32 for a strict-precision path. Outputs keep the caller's dtype.
    """
    out_dtype = encoder_out.dtype
    B, P, E = encoder_out.shape
    D = decoder_hidden.shape[-1]
    A = params["w_enc"].shape[0]
    mxu_dtype = jnp.dtype(mxu_dtype if mxu_dtype is not None else out_dtype)

    # Pad the pixel axis: multiple of 128 once P >= 128 (lane-dense alpha store,
    # e.g. 196 -> 256), else multiple of 8 (sublane-aligned reshapes). Padded pixel
    # scores are masked to -inf inside the kernel. A/E/D are used as full-dim blocks;
    # at production sizes keep them multiples of 128.
    P_pad = _round_up(P, 128) if P >= 128 else _round_up(P, 8)
    if P_pad != P:
        encoder_out = jnp.pad(encoder_out, ((0, 0), (0, P_pad - P), (0, 0)))

    enc = encoder_out.astype(mxu_dtype)
    dec = decoder_hidden.astype(mxu_dtype)
    # Pre-transposed weights -> clean (M,K)x(K,N) MXU contraction, no in-kernel relayout.
    w_enc_t = params["w_enc"].T.astype(mxu_dtype)          # (E, A)
    w_dec_t = params["w_dec"].T.astype(mxu_dtype)          # (D, A)
    w_full = params["w_full"].astype(jnp.float32).reshape(1, A)   # VPU operand, keep f32
    b_sum = (params["b_enc"] + params["b_dec"]).astype(jnp.float32).reshape(1, A)
    # b_full intentionally dropped (uniform pre-softmax shift; cancels exactly).

    single_buf = _single_buffered_weights_supported()
    weights_mode = pl.Buffered(1) if single_buf else None

    mxu_itemsize = mxu_dtype.itemsize
    out_itemsize = jnp.dtype(out_dtype).itemsize
    budget, cap = _vmem_budget_bytes()
    if batch_tile is None:
        TB = _pick_batch_tile(B, P_pad, E, D, A, mxu_itemsize, out_itemsize,
                              single_buf, budget)
    else:
        TB = batch_tile
    assert B % TB == 0, "batch tile must divide the batch"

    ws = _working_set_bytes(TB, P_pad, E, D, A, mxu_itemsize, out_itemsize, single_buf)
    if vmem_limit_bytes is None:
        vmem_limit_bytes = min(cap, max(32 << 20, int(ws * 1.25) + (4 << 20)))

    def wspec(shape):
        idx = lambda i, _n=len(shape): (0,) * _n
        if weights_mode is None:
            return pl.BlockSpec(shape, idx)
        return pl.BlockSpec(shape, idx, pipeline_mode=weights_mode)

    kernel = functools.partial(attention_kernel, num_pixels=P)

    awe, alpha = pl.pallas_call(
        kernel,
        out_shape=(
            jax.ShapeDtypeStruct((B, E), out_dtype),
            jax.ShapeDtypeStruct((B, P_pad), out_dtype),
        ),
        grid_spec=pltpu.PrefetchScalarGridSpec(
            num_scalar_prefetch=0,
            grid=(B // TB,),
            in_specs=[
                pl.BlockSpec((TB, P_pad, E), lambda i: (i, 0, 0)),   # encoder_out
                pl.BlockSpec((TB, D), lambda i: (i, 0)),             # decoder_hidden
                wspec((E, A)),                                       # W_enc^T (constant)
                wspec((D, A)),                                       # W_dec^T (constant)
                wspec((1, A)),                                       # w_full  (constant)
                wspec((1, A)),                                       # b_enc + b_dec
            ],
            out_specs=(
                pl.BlockSpec((TB, E), lambda i: (i, 0)),             # awe
                pl.BlockSpec((TB, P_pad), lambda i: (i, 0)),         # alpha
            ),
        ),
        compiler_params=pltpu.CompilerParams(
            dimension_semantics=("parallel",),
            vmem_limit_bytes=int(vmem_limit_bytes)),
    )(enc, dec, w_enc_t, w_dec_t, w_full, b_sum)

    if P_pad != P:
        alpha = alpha[:, :P]
    return awe, alpha


# ----------------------------------------------------------------- reference & init

def attention_ref(encoder_out, decoder_hidden, p):
    """Pure-JAX reference mirroring the PyTorch forward (including b_full)."""
    att1 = encoder_out @ p["w_enc"].T + p["b_enc"]
    att2 = decoder_hidden @ p["w_dec"].T + p["b_dec"]
    att = jnp.maximum(att1 + att2[:, None, :], 0.0)
    scores = (att @ p["w_full"].T)[..., 0] + p["b_full"][0]
    alpha = jax.nn.softmax(scores, axis=1)
    awe = (encoder_out * alpha[:, :, None]).sum(axis=1)
    return awe, alpha


def init_params(key, encoder_dim, decoder_dim, attention_dim):
    """Deterministic nn.Linear-style init (uniform +/- 1/sqrt(fan_in))."""
    k = jax.random.split(key, 6)

    def lin(kw, kb, out_d, in_d):
        bound = 1.0 / jnp.sqrt(in_d)
        w = jax.random.uniform(kw, (out_d, in_d), jnp.float32, -bound, bound)
        b = jax.random.uniform(kb, (out_d,), jnp.float32, -bound, bound)
        return w, b

    w_enc, b_enc = lin(k[0], k[1], attention_dim, encoder_dim)
    w_dec, b_dec = lin(k[2], k[3], attention_dim, decoder_dim)
    w_full, b_full = lin(k[4], k[5], 1, attention_dim)
    return dict(w_enc=w_enc, b_enc=b_enc, w_dec=w_dec, b_dec=b_dec,
                w_full=w_full, b_full=b_full)


# -------------------------------------------------------------------------- driver

if __name__ == "__main__":
    B, P = 2, 16                       # batch, num_pixels
    encoder_dim, decoder_dim, attention_dim = 32, 32, 32

    key = jax.random.PRNGKey(0)
    k_enc, k_dec, k_par = jax.random.split(key, 3)
    encoder_out = jax.random.normal(k_enc, (B, P, encoder_dim), jnp.float32)
    decoder_hidden = jax.random.normal(k_dec, (B, decoder_dim), jnp.float32)
    params = init_params(k_par, encoder_dim, decoder_dim, attention_dim)

    awe_r, alpha_r = attention_ref(encoder_out, decoder_hidden, params)

    # 1) f32-MXU-operand path: strict check (only the approx softmax reciprocal and
    #    the b_full shift-cancellation differ from the reference, both << 2e-3).
    awe, alpha = attention_forward(encoder_out, decoder_hidden, params,
                                   mxu_dtype=jnp.float32)
    jax.block_until_ready((awe, alpha))
    assert awe.shape == (B, encoder_dim) and alpha.shape == (B, P)
    assert jnp.allclose(awe, awe_r, atol=2e-3, rtol=2e-3)
    assert jnp.allclose(alpha, alpha_r, atol=2e-3, rtol=2e-3)

    # 2) Default bf16-MXU-operand path (recommended on v5e/v6e/v7x): accumulation,
    #    ReLU and softmax stay f32.
    awe_bf, alpha_bf = attention_forward(encoder_out, decoder_hidden, params)
    jax.block_until_ready((awe_bf, alpha_bf))
    assert jnp.allclose(awe_bf, awe_r, atol=5e-2, rtol=5e-2)
    assert jnp.allclose(alpha_bf, alpha_r, atol=5e-2, rtol=5e-2)

    # 3) Non-aligned pixel count: exercises the pad-to-8 + (-inf) softmax masking path.
    P2 = 12
    enc2 = encoder_out[:, :P2, :]
    awe2_r, alpha2_r = attention_ref(enc2, decoder_hidden, params)
    awe2, alpha2 = attention_forward(enc2, decoder_hidden, params,
                                     mxu_dtype=jnp.float32)
    jax.block_until_ready((awe2, alpha2))
    assert awe2.shape == (B, encoder_dim) and alpha2.shape == (B, P2)
    assert jnp.allclose(awe2, awe2_r, atol=2e-3, rtol=2e-3)
    assert jnp.allclose(alpha2, alpha2_r, atol=2e-3, rtol=2e-3)

    print("KERNEL_OK")
</pallas_src>

<mosaic_0001>
module attributes {stable_mosaic.version = 11 : i64} {
  func.func @attention_kernel(%arg0: i32, %arg1: memref<2x16x32xf32, #tpu.memory_space<vmem>>, %arg2: memref<2x32xf32, #tpu.memory_space<vmem>>, %arg3: memref<32x32xf32, #tpu.memory_space<vmem>>, %arg4: memref<32x32xf32, #tpu.memory_space<vmem>>, %arg5: memref<1x32xf32, #tpu.memory_space<vmem>>, %arg6: memref<1x32xf32, #tpu.memory_space<vmem>>, %arg7: memref<2x32xf32, #tpu.memory_space<vmem>>, %arg8: memref<2x16xf32, #tpu.memory_space<vmem>>) attributes {dimension_semantics = [#tpu.dimension_semantics<parallel>], iteration_bounds = array<i64: 1>, scalar_prefetch = 0 : i64, scratch_operands = 0 : i64, tpu.core_type = #tpu.core_type<tc>, window_params = [{transform_indices = @transform_0, window_bounds = array<i64: 2, 16, 32>}, {transform_indices = @transform_1, window_bounds = array<i64: 2, 32>}, {pipeline_mode = #tpu.pipeline_mode<synchronous>, transform_indices = @transform_2, window_bounds = array<i64: 32, 32>}, {pipeline_mode = #tpu.pipeline_mode<synchronous>, transform_indices = @transform_3, window_bounds = array<i64: 32, 32>}, {pipeline_mode = #tpu.pipeline_mode<synchronous>, transform_indices = @transform_4, window_bounds = array<i64: 1, 32>}, {pipeline_mode = #tpu.pipeline_mode<synchronous>, transform_indices = @transform_5, window_bounds = array<i64: 1, 32>}, {transform_indices = @transform_6, window_bounds = array<i64: 2, 32>}, {transform_indices = @transform_7, window_bounds = array<i64: 2, 16>}]} {
    %c0 = arith.constant 0 : index
    %c0_0 = arith.constant 0 : index
    %c0_1 = arith.constant 0 : index
    %0 = vector.load %arg1[%c0, %c0_0, %c0_1] : memref<2x16x32xf32, #tpu.memory_space<vmem>>, vector<2x16x32xf32>
    %c0_2 = arith.constant 0 : index
    %c0_3 = arith.constant 0 : index
    %1 = vector.load %arg2[%c0_2, %c0_3] : memref<2x32xf32, #tpu.memory_space<vmem>>, vector<2x32xf32>
    %2 = vector.shape_cast %0 : vector<2x16x32xf32> to vector<32x32xf32>
    %c0_4 = arith.constant 0 : index
    %c0_5 = arith.constant 0 : index
    %3 = vector.load %arg3[%c0_4, %c0_5] : memref<32x32xf32, #tpu.memory_space<vmem>>, vector<32x32xf32>
    %cst = arith.constant dense<0.000000e+00> : vector<32x32xf32>
    %4 = tpu.matmul %2, %3, %cst {dimension_numbers = #tpu.dot_dimension_numbers<[1], [0], [0], [1], [0, 0, 1, 1], [], []>} : vector<32x32xf32>, vector<32x32xf32>, vector<32x32xf32> -> vector<32x32xf32>
    %c0_6 = arith.constant 0 : index
    %c0_7 = arith.constant 0 : index
    %5 = vector.load %arg4[%c0_6, %c0_7] : memref<32x32xf32, #tpu.memory_space<vmem>>, vector<32x32xf32>
    %cst_8 = arith.constant dense<0.000000e+00> : vector<2x32xf32>
    %6 = tpu.matmul %1, %5, %cst_8 {dimension_numbers = #tpu.dot_dimension_numbers<[1], [0], [0], [1], [0, 0, 1, 1], [], []>} : vector<2x32xf32>, vector<32x32xf32>, vector<2x32xf32> -> vector<2x32xf32>
    %c0_9 = arith.constant 0 : index
    %c0_10 = arith.constant 0 : index
    %7 = vector.load %arg6[%c0_9, %c0_10] : memref<1x32xf32, #tpu.memory_space<vmem>>, vector<1x32xf32>
    %8 = vector.broadcast %7 : vector<1x32xf32> to vector<2x32xf32>
    %9 = arith.addf %6, %8 : vector<2x32xf32>
    %10 = vector.shape_cast %4 : vector<32x32xf32> to vector<2x16x32xf32>
    %11 = vector.shape_cast %9 : vector<2x32xf32> to vector<2x1x32xf32>
    %12 = vector.broadcast %11 : vector<2x1x32xf32> to vector<2x16x32xf32>
    %13 = arith.addf %10, %12 : vector<2x16x32xf32>
    %cst_11 = arith.constant 0.000000e+00 : f32
    %14 = vector.broadcast %cst_11 : f32 to vector<2x16x32xf32>
    %15 = arith.maximumf %13, %14 : vector<2x16x32xf32>
    %c0_12 = arith.constant 0 : index
    %c0_13 = arith.constant 0 : index
    %16 = vector.load %arg5[%c0_12, %c0_13] : memref<1x32xf32, #tpu.memory_space<vmem>>, vector<1x32xf32>
    %17 = vector.shape_cast %16 : vector<1x32xf32> to vector<1x1x32xf32>
    %18 = vector.broadcast %17 : vector<1x1x32xf32> to vector<2x16x32xf32>
    %19 = arith.mulf %15, %18 : vector<2x16x32xf32>
    %cst_14 = arith.constant dense<0.000000e+00> : vector<2x16xf32>
    %20 = vector.multi_reduction <add>, %19, %cst_14 [2] : vector<2x16x32xf32> to vector<2x16xf32>
    %cst_15 = arith.constant dense<0xFF800000> : vector<2xf32>
    %21 = vector.multi_reduction <maximumf>, %20, %cst_15 [1] : vector<2x16xf32> to vector<2xf32>
    %22 = vector.shape_cast %21 : vector<2xf32> to vector<2x1xf32>
    %23 = vector.broadcast %22 : vector<2x1xf32> to vector<2x16xf32>
    %24 = arith.subf %20, %23 : vector<2x16xf32>
    %25 = math.exp %24 : vector<2x16xf32>
    %cst_16 = arith.constant dense<0.000000e+00> : vector<2xf32>
    %26 = vector.multi_reduction <add>, %25, %cst_16 [1] : vector<2x16xf32> to vector<2xf32>
    %27 = vector.shape_cast %26 : vector<2xf32> to vector<2x1xf32>
    %28 = tpu.reciprocal %27 {approx = true} : vector<2x1xf32> -> vector<2x1xf32>
    %29 = vector.broadcast %28 : vector<2x1xf32> to vector<2x16xf32>
    %30 = arith.mulf %25, %29 : vector<2x16xf32>
    %31 = vector.shape_cast %30 : vector<2x16xf32> to vector<2x1x16xf32>
    "tpu.trace_start"() <{level = 10 : i32, message = "bqp,bpe->bqe"}> : () -> ()
    %cst_17 = arith.constant dense<0.000000e+00> : vector<2x1x32xf32>
    %32 = tpu.matmul %31, %0, %cst_17 {dimension_numbers = #tpu.dot_dimension_numbers<[2], [1], [1], [2], [0, 0, 0, 1, 1, 2], [0], [0]>} : vector<2x1x16xf32>, vector<2x16x32xf32>, vector<2x1x32xf32> -> vector<2x1x32xf32>
    "tpu.trace_stop"() : () -> ()
    %33 = vector.shape_cast %32 : vector<2x1x32xf32> to vector<2x32xf32>
    %c0_18 = arith.constant 0 : index
    %c0_19 = arith.constant 0 : index
    %34 = vector.load %arg7[%c0_18, %c0_19] : memref<2x32xf32, #tpu.memory_space<vmem>>, vector<2x32xf32>
    tpu.vector_store %arg7[%c0_18, %c0_19], %33 {strides = array<i32>} : memref<2x32xf32, #tpu.memory_space<vmem>>, vector<2x32xf32>,
    %c0_20 = arith.constant 0 : index
    %c0_21 = arith.constant 0 : index
    %35 = vector.load %arg8[%c0_20, %c0_21] : memref<2x16xf32, #tpu.memory_space<vmem>>, vector<2x16xf32>
    tpu.vector_store %arg8[%c0_20, %c0_21], %30 {strides = array<i32>} : memref<2x16xf32, #tpu.memory_space<vmem>>, vector<2x16xf32>,
    return
  }
  func.func @transform_0(%arg0: i32) -> (i32, i32, i32) {
    %c0_i32 = arith.constant 0 : i32
    %c0_i32_0 = arith.constant 0 : i32
    %c0_i32_1 = arith.constant 0 : i32
    return %arg0, %c0_i32, %c0_i32_0 : i32, i32, i32
  }
  func.func @transform_1(%arg0: i32) -> (i32, i32) {
    %c0_i32 = arith.constant 0 : i32
    %c0_i32_0 = arith.constant 0 : i32
    return %arg0, %c0_i32 : i32, i32
  }
  func.func @transform_2(%arg0: i32) -> (i32, i32) {
    %c0_i32 = arith.constant 0 : i32
    %c0_i32_0 = arith.constant 0 : i32
    %c0_i32_1 = arith.constant 0 : i32
    return %c0_i32, %c0_i32_0 : i32, i32
  }
  func.func @transform_3(%arg0: i32) -> (i32, i32) {
    %c0_i32 = arith.constant 0 : i32
    %c0_i32_0 = arith.constant 0 : i32
    %c0_i32_1 = arith.constant 0 : i32
    return %c0_i32, %c0_i32_0 : i32, i32
  }
  func.func @transform_4(%arg0: i32) -> (i32, i32) {
    %c0_i32 = arith.constant 0 : i32
    %c0_i32_0 = arith.constant 0 : i32
    %c0_i32_1 = arith.constant 0 : i32
    return %c0_i32, %c0_i32_0 : i32, i32
  }
  func.func @transform_5(%arg0: i32) -> (i32, i32) {
    %c0_i32 = arith.constant 0 : i32
    %c0_i32_0 = arith.constant 0 : i32
    %c0_i32_1 = arith.constant 0 : i32
    return %c0_i32, %c0_i32_0 : i32, i32
  }
  func.func @transform_6(%arg0: i32) -> (i32, i32) {
    %c0_i32 = arith.constant 0 : i32
    %c0_i32_0 = arith.constant 0 : i32
    return %arg0, %c0_i32 : i32, i32
  }
  func.func @transform_7(%arg0: i32) -> (i32, i32) {
    %c0_i32 = arith.constant 0 : i32
    %c0_i32_0 = arith.constant 0 : i32
    return %arg0, %c0_i32 : i32, i32
  }
}

</mosaic_0001>

<llo_original>
// kernel: tpu_custom_call.1
$region0: #{tpu_custom_call.1}
  #allocation0 [shape = 'u32[]', space=smem, size = 0x4, offset = 0x4, fixed_abs, tag = 'smem constant byte address 0x4 - core index']
  #allocation1 [shape = 'u32[144,128]{1,0:T(1,128)}', space=vmem, size = 0x12000, scoped, tag = 'internal scratch']
  %s0 = inlined_call_operand.hbm [shape: f32[2,16,32], index: 0, kind: input, shape index: {}]
  %s1 = inlined_call_operand.vmem [shape: f32[2,32], index: 1, kind: input, shape index: {}]
  %s2 = inlined_call_operand.hbm [shape: f32[32,32], index: 2, kind: input, shape index: {}]
  %s3 = inlined_call_operand.hbm [shape: f32[32,32], index: 3, kind: input, shape index: {}]
  %s4 = inlined_call_operand.vmem [shape: f32[1,32], index: 4, kind: input, shape index: {}]
  %s5 = inlined_call_operand.vmem [shape: f32[1,32], index: 5, kind: input, shape index: {}]
  %s6 = inlined_call_operand.hbm [shape: f32[2,32], index: 6, kind: output, shape index: {0}]
  %s7 = inlined_call_operand.hbm [shape: f32[2,16], index: 7, kind: output, shape index: {1}]
  %8 = xla_tuple %s6, %s7
  %s9 = sld [smem:[#allocation0]]
  $region54: #{tpu_custom_call.1} parent=0
    _
  %s11 = ssub.s32 1, %s9
  %s12 = scalar_select 0, %s11, %s9
  $region1: #{tpu_custom_call.1} parent=0
    #allocation2 [shape = 'u8[16384]{0}', space=vmem, size = 0x4000, scoped, tag = 'input window, operand 0, single buffered']
    #allocation3 [shape = 's32[1]{0}', space=sflag, size = 0x4, scoped, tag = 'scoped memory for tpu_custom_call.1']
    #allocation4 [shape = 's32[1]{0}', space=sflag, size = 0x4, scoped, tag = 'scoped memory for tpu_custom_call.1']
    #allocation5 [shape = 'u8[16384]{0}', space=vmem, size = 0x4000, scoped, tag = 'input window, operand 2, single buffered']
    #allocation6 [shape = 's32[1]{0}', space=sflag, size = 0x4, scoped, tag = 'scoped memory for tpu_custom_call.1']
    #allocation7 [shape = 'u8[16384]{0}', space=vmem, size = 0x4000, scoped, tag = 'input window, operand 3, single buffered']
    #allocation8 [shape = 'u8[1024]{0}', space=vmem, size = 0x400, scoped, tag = 'output window, operand 0, single buffered']
    #allocation9 [shape = 'u8[1024]{0}', space=vmem, size = 0x400, scoped, tag = 'output window, operand 1, single buffered']
    #allocation10 [shape = 's32[1]{0}', space=sflag, size = 0x4, scoped, tag = 'scoped memory for tpu_custom_call.1']
    %13 = vsyncpa [#allocation3], 0
    %14 = vsyncpa [#allocation6], 0
    %15 = vsyncpa [#allocation4], 0
    %16 = vsyncpa [#allocation10], 0
    // Predicated region
    $region2: #{tpu_custom_call.1} parent=1 // pred_check
      _
    $region3: #{tpu_custom_call.1} parent=1 // pred_check_branch
      %18 = sbr.rel (0) target = $region5
    $region4: #{tpu_custom_call.1} parent=1 // pred_region
      %s20 = ssub.s32 512, 512
      %21 = vsyncadd [#allocation3], %s20
      %s22 = sshll.u32 [#allocation2], 4
      %s23 = int_to_ptr.vmem [resolvable:$true] %s22
      %28 = dma.hbm_to_vmem [thread:$0]  %s0, 512, %s23, [#allocation3], 128, 128, 8
    $region5: #{tpu_custom_call.1} parent=1 // pred_fallthru
      _
    // Predicated region
    $region6: #{tpu_custom_call.1} parent=1 // pred_check
      _
    $region7: #{tpu_custom_call.1} parent=1 // pred_check_branch
      %30 = sbr.rel (0) target = $region9
    $region8: #{tpu_custom_call.1} parent=1 // pred_region
      _
    $region9: #{tpu_custom_call.1} parent=1 // pred_fallthru
      _
    // Predicated region
    $region10: #{tpu_custom_call.1} parent=1 // pred_check
      _
    $region11: #{tpu_custom_call.1} parent=1 // pred_check_branch
      %32 = sbr.rel (0) target = $region13
    $region12: #{tpu_custom_call.1} parent=1 // pred_region
      %s34 = ssub.s32 512, 512
      %35 = vsyncadd [#allocation6], %s34
      %s36 = sshll.u32 [#allocation5], 4
      %s37 = int_to_ptr.vmem [resolvable:$true] %s36
      %42 = dma.hbm_to_vmem [thread:$0]  %s2, 512, %s37, [#allocation6], 128, 128, 8
    $region13: #{tpu_custom_call.1} parent=1 // pred_fallthru
      _
    // Predicated region
    $region14: #{tpu_custom_call.1} parent=1 // pred_check
      _
    $region15: #{tpu_custom_call.1} parent=1 // pred_check_branch
      %44 = sbr.rel (0) target = $region17
    $region16: #{tpu_custom_call.1} parent=1 // pred_region
      %s46 = ssub.s32 512, 512
      %47 = vsyncadd [#allocation6], %s46
      %s48 = sshll.u32 [#allocation7], 4
      %s49 = int_to_ptr.vmem [resolvable:$true] %s48
      %54 = dma.hbm_to_vmem [thread:$0]  %s3, 512, %s49, [#allocation6], 128, 128, 8
    $region17: #{tpu_custom_call.1} parent=1 // pred_fallthru
      _
    // Predicated region
    $region18: #{tpu_custom_call.1} parent=1 // pred_check
      _
    $region19: #{tpu_custom_call.1} parent=1 // pred_check_branch
      %56 = sbr.rel (0) target = $region21
    $region20: #{tpu_custom_call.1} parent=1 // pred_region
      _
    $region21: #{tpu_custom_call.1} parent=1 // pred_fallthru
      _
    // Predicated region
    $region22: #{tpu_custom_call.1} parent=1 // pred_check
      _
    $region23: #{tpu_custom_call.1} parent=1 // pred_check_branch
      %58 = sbr.rel (0) target = $region25
    $region24: #{tpu_custom_call.1} parent=1 // pred_region
      _
    $region25: #{tpu_custom_call.1} parent=1 // pred_fallthru
      _
    // Predicated region
    $region26: #{tpu_custom_call.1} parent=1 // pred_check
      _
    $region27: #{tpu_custom_call.1} parent=1 // pred_check_branch
      %60 = sbr.rel (0) target = $region29
    $region28: #{tpu_custom_call.1} parent=1 // pred_region
      %61 = dma.done [#allocation3], 512
    $region29: #{tpu_custom_call.1} parent=1 // pred_fallthru
      _
    // Predicated region
    $region30: #{tpu_custom_call.1} parent=1 // pred_check
      _
    $region31: #{tpu_custom_call.1} parent=1 // pred_check_branch
      %63 = sbr.rel (0) target = $region33
    $region32: #{tpu_custom_call.1} parent=1 // pred_region
      %64 = dma.done [#allocation6], 512
    $region33: #{tpu_custom_call.1} parent=1 // pred_fallthru
      _
    // Predicated region
    $region34: #{tpu_custom_call.1} parent=1 // pred_check
      _
    $region35: #{tpu_custom_call.1} parent=1 // pred_check_branch
      %66 = sbr.rel (0) target = $region37
    $region36: #{tpu_custom_call.1} parent=1 // pred_region
      %67 = dma.done [#allocation6], 512
    $region37: #{tpu_custom_call.1} parent=1 // pred_fallthru
      _
    %v68 = vld [vmem:[#allocation2] sm:$0xff]
    %v69 = vld [vmem:[#allocation2 + $0x8] sm:$0xff]
    %v70 = vld [vmem:[#allocation2 + $0x10] sm:$0xff]
    %v71 = vld [vmem:[#allocation2 + $0x18] sm:$0xff]
    %v72 = vld [vmem:[%s1] sm:$0x3]
    %v73 = vld [vmem:[#allocation5] sm:$0xff]
    %v74 = vld [vmem:[#allocation5 + $0x8] sm:$0xff]
    %v75 = vld [vmem:[#allocation5 + $0x10] sm:$0xff]
    %v76 = vld [vmem:[#allocation5 + $0x18] sm:$0xff]
    %vm77 = vcmask 261120
    %v79 = vsel %vm77, %v68, 0
    %v82 = vsel %vm77, %v69, 0
    %v85 = vsel %vm77, %v70, 0
    %v88 = vsel %vm77, %v71, 0
    %90 = vmatprep.subr.mxu0 0.0
    %91 = vmatpush1.msra.mxu0 %v73
    %92 = vmatprep.subr.mxu0 0.0
    %93 = vmatpush1.msra.mxu0 %v74
    %94 = vmatprep.subr.mxu0 0.0
    %95 = vmatpush1.msra.mxu0 %v75
    %96 = vmatprep.subr.mxu0 0.0
    %97 = vmatpush1.msra.mxu0 %v76
    %98 = vmatprep.subr.mxu0 0.0
    %99 = vmatpush1.msra.mxu0 0.0
    %100 = vmatprep.subr.mxu0 0.0
    %101 = vmatpush1.msra.mxu0 0.0
    %102 = vmatprep.subr.mxu0 0.0
    %103 = vmatpush1.msra.mxu0 0.0
    %104 = vmatprep.subr.mxu0 0.0
    %105 = vmatpush1.msra.mxu0 0.0
    %106 = vmatprep.subr.mxu0 0.0
    %107 = vmatpush1.msra.mxu0 0.0
    %108 = vmatprep.subr.mxu0 0.0
    %109 = vmatpush1.msra.mxu0 0.0
    %110 = vmatprep.subr.mxu0 0.0
    %111 = vmatpush1.msra.mxu0 0.0
    %112 = vmatprep.subr.mxu0 0.0
    %113 = vmatpush1.msra.mxu0 0.0
    %114 = vmatprep.subr.mxu0 0.0
    %115 = vmatpush1.msra.mxu0 0.0
    %116 = vmatprep.subr.mxu0 0.0
    %117 = vmatpush1.msra.mxu0 0.0
    %118 = vmatprep.subr.mxu0 0.0
    %119 = vmatpush1.msra.mxu0 0.0
    %120 = vmatprep.subr.mxu0 0.0
    %121 = vmatpush1.msra.mxu0 0.0
    %122 = vmatprep.subr.mxu0 0.0
    %123 = vmatpush1.msra.mxu0 0.0
    %124 = vmatprep.subr.mxu0 0.0
    %125 = vmatpush1.msra.mxu0 0.0
    %126 = vmatprep.subr.mxu0 0.0
    %127 = vmatpush1.msra.mxu0 0.0
    %128 = vmatprep.subr.mxu0 0.0
    %129 = vmatpush1.msra.mxu0 0.0
    %130 = vmatprep.subr.mxu0 0.0
    %131 = vmatpush1.msra.mxu0 0.0
    %132 = vmatprep.subr.mxu0 0.0
    %133 = vmatpush1.msra.mxu0 0.0
    %134 = vmatprep.subr.mxu0 0.0
    %135 = vmatpush1.msra.mxu0 0.0
    %136 = vmatprep.subr.mxu0 0.0
    %137 = vmatpush1.msra.mxu0 0.0
    %138 = vmatprep.subr.mxu0 0.0
    %139 = vmatpush1.msra.mxu0 0.0
    %140 = vmatprep.subr.mxu0 0.0
    %141 = vmatpush1.msra.mxu0 0.0
    %142 = vmatprep.subr.mxu0 0.0
    %143 = vmatpush1.msra.mxu0 0.0
    %144 = vmatprep.subr.mxu0 0.0
    %145 = vmatpush1.msra.mxu0 0.0
    %146 = vmatprep.subr.mxu0 0.0
    %147 = vmatpush1.msra.mxu0 0.0
    %148 = vmatprep.subr.mxu0 0.0
    %149 = vmatpush1.msra.mxu0 0.0
    %150 = vmatprep.subr.mxu0 0.0
    %151 = vmatpush1.msra.mxu0 0.0
    %152 = vmatprep.subr.mxu0 0.0
    %153 = vmatpush1.msra.mxu0 0.0
    %154 = vmatprep.mubr.f32.mxu0 0.0
    %155 = vmatmul.mubr.f32.gmra.mrb[0].mxu0 %v79
    %v156 = vpop.f32.mrb[0].mxu0
    %v157 = vadd.f32 0.0, %v156
    %v158 = vpop.f32.mrb[0].mxu0
    %159 = vmatprep.mubr.f32.mxu0 0.0
    %160 = vmatmul.mubr.f32.gmra.mrb[0].mxu0 %v82
    %v161 = vpop.f32.mrb[0].mxu0
    %v162 = vadd.f32 0.0, %v161
    %v163 = vpop.f32.mrb[0].mxu0
    %164 = vmatprep.mubr.f32.mxu0 0.0
    %165 = vmatmul.mubr.f32.gmra.mrb[0].mxu0 %v85
    %v166 = vpop.f32.mrb[0].mxu0
    %v167 = vadd.f32 0.0, %v166
    %v168 = vpop.f32.mrb[0].mxu0
    %169 = vmatprep.mubr.f32.mxu0 0.0
    %170 = vmatmul.mubr.f32.gmra.mrb[0].mxu0 %v88
    %v171 = vpop.f32.mrb[0].mxu0
    %v172 = vadd.f32 0.0, %v171
    %v173 = vpop.f32.mrb[0].mxu0
    %174 = vdwg.mxu0
    %v175 = vld [vmem:[#allocation7] sm:$0xff]
    %v176 = vld [vmem:[#allocation7 + $0x8] sm:$0xff]
    %v177 = vld [vmem:[#allocation7 + $0x10] sm:$0xff]
    %v178 = vld [vmem:[#allocation7 + $0x18] sm:$0xff]
    %v179 = vld [vmem:[%s5] sm:$0x1]
    %v181 = vlaneseq
    %v182 = vshrl.u32 %v181, 7
    %v183 = vsub.s32 0, %v182
    %v184 = vrot.slane %v179, %v183
    %v187 = vsel %vm77, %v72, 0
    %189 = vmatprep.subr.mxu0 0.0
    %190 = vmatpush1.msra.mxu0 %v175
    %191 = vmatprep.subr.mxu0 0.0
    %192 = vmatpush1.msra.mxu0 %v176
    %193 = vmatprep.subr.mxu0 0.0
    %194 = vmatpush1.msra.mxu0 %v177
    %195 = vmatprep.subr.mxu0 0.0
    %196 = vmatpush1.msra.mxu0 %v178
    %197 = vmatprep.subr.mxu0 0.0
    %198 = vmatpush1.msra.mxu0 0.0
    %199 = vmatprep.subr.mxu0 0.0
    %200 = vmatpush1.msra.mxu0 0.0
    %201 = vmatprep.subr.mxu0 0.0
    %202 = vmatpush1.msra.mxu0 0.0
    %203 = vmatprep.subr.mxu0 0.0
    %204 = vmatpush1.msra.mxu0 0.0
    %205 = vmatprep.subr.mxu0 0.0
    %206 = vmatpush1.msra.mxu0 0.0
    %207 = vmatprep.subr.mxu0 0.0
    %208 = vmatpush1.msra.mxu0 0.0
    %209 = vmatprep.subr.mxu0 0.0
    %210 = vmatpush1.msra.mxu0 0.0
    %211 = vmatprep.subr.mxu0 0.0
    %212 = vmatpush1.msra.mxu0 0.0
    %213 = vmatprep.subr.mxu0 0.0
    %214 = vmatpush1.msra.mxu0 0.0
    %215 = vmatprep.subr.mxu0 0.0
    %216 = vmatpush1.msra.mxu0 0.0
    %217 = vmatprep.subr.mxu0 0.0
    %218 = vmatpush1.msra.mxu0 0.0
    %219 = vmatprep.subr.mxu0 0.0
    %220 = vmatpush1.msra.mxu0 0.0
    %221 = vmatprep.subr.mxu0 0.0
    %222 = vmatpush1.msra.mxu0 0.0
    %223 = vmatprep.subr.mxu0 0.0
    %224 = vmatpush1.msra.mxu0 0.0
    %225 = vmatprep.subr.mxu0 0.0
    %226 = vmatpush1.msra.mxu0 0.0
    %227 = vmatprep.subr.mxu0 0.0
    %228 = vmatpush1.msra.mxu0 0.0
    %229 = vmatprep.subr.mxu0 0.0
    %230 = vmatpush1.msra.mxu0 0.0
    %231 = vmatprep.subr.mxu0 0.0
    %232 = vmatpush1.msra.mxu0 0.0
    %233 = vmatprep.subr.mxu0 0.0
    %234 = vmatpush1.msra.mxu0 0.0
    %235 = vmatprep.subr.mxu0 0.0
    %236 = vmatpush1.msra.mxu0 0.0
    %237 = vmatprep.subr.mxu0 0.0
    %238 = vmatpush1.msra.mxu0 0.0
    %239 = vmatprep.subr.mxu0 0.0
    %240 = vmatpush1.msra.mxu0 0.0
    %241 = vmatprep.subr.mxu0 0.0
    %242 = vmatpush1.msra.mxu0 0.0
    %243 = vmatprep.subr.mxu0 0.0
    %244 = vmatpush1.msra.mxu0 0.0
    %245 = vmatprep.subr.mxu0 0.0
    %246 = vmatpush1.msra.mxu0 0.0
    %247 = vmatprep.subr.mxu0 0.0
    %248 = vmatpush1.msra.mxu0 0.0
    %249 = vmatprep.subr.mxu0 0.0
    %250 = vmatpush1.msra.mxu0 0.0
    %251 = vmatprep.subr.mxu0 0.0
    %252 = vmatpush1.msra.mxu0 0.0
    %253 = vmatprep.mubr.f32.mxu0 0.0
    %254 = vmatmul.mubr.f32.gmra.mrb[0].mxu0 %v187
    %v255 = vpop.f32.mrb[0].mxu0
    %v256 = vadd.f32 %v184, %v255
    %v257 = vpop.f32.mrb[0].mxu0
    %258 = vdwg.mxu0
    %v261 = vunpack.c.l.s4 1966171168
    %v262 = vunpack.c.0.s8 %v261
    %v263 = vlaneseq
    %v264 = vshrl.u32 %v263, 7
    %v265 = vsub.s32 %v262, %v264
    %v266 = vrot.slane %v256, %v265
    %v267 = vcombine.high %v266, %v266
    %v269 = vunpack.c.l.s4 1966171168
    %v270 = vunpack.c.0.s8 %v269
    %v271 = vlaneseq
    %v272 = vshrl.u32 %v271, 7
    %v273 = vsub.s32 %v270, %v272
    %v274 = vrot.slane %v266, %v273
    %v276 = vunpack.c.l.s4 1966171168
    %v277 = vunpack.c.0.s8 %v276
    %v278 = vlaneseq
    %v279 = vshrl.u32 %v278, 7
    %v280 = vsub.s32 %v277, %v279
    %v281 = vrot.slane %v267, %v280
    %v282 = vlaneseq
    %v283 = vshrl.u32 %v282, 7
    %v284 = vsub.s32 0, %v283
    %v285 = vrot.slane %v274, %v284
    %v286 = vlaneseq
    %v287 = vshrl.u32 %v286, 7
    %v288 = vsub.s32 0, %v287
    %v289 = vrot.slane %v281, %v288
    %v292 = vadd.f32 %v157, %v285
    %v293 = vadd.f32 %v162, %v285
    %v294 = vadd.f32 %v167, %v289
    %v295 = vadd.f32 %v172, %v289
    %v296 = vmax.f32 %v292, 0.0
    %v297 = vmax.f32 %v293, 0.0
    %v298 = vmax.f32 %v294, 0.0
    %v299 = vmax.f32 %v295, 0.0
    %v300 = vld [vmem:[%s4] sm:$0x1]
    %v302 = vlaneseq
    %v303 = vshrl.u32 %v302, 7
    %v304 = vsub.s32 0, %v303
    %v305 = vrot.slane %v300, %v304
    %v307 = vmul.f32 %v296, %v305
    %v308 = vmul.f32 %v297, %v305
    %v309 = vmul.f32 %v298, %v305
    %v310 = vmul.f32 %v299, %v305
    %v311 = vsel %vm77, %v307, 0.0
    %312 = vadd.xlane.f32.xlu0 %v311
    %v313 = vpop.xlane.xlu0 %312
    %v314 = vsel %vm77, %v308, 0.0
    %315 = vadd.xlane.f32.xlu0 %v314
    %v316 = vpop.xlane.xlu0 %315
    %v317 = vsel %vm77, %v309, 0.0
    %318 = vadd.xlane.f32.xlu0 %v317
    %v319 = vpop.xlane.xlu0 %318
    %v320 = vsel %vm77, %v310, 0.0
    %321 = vadd.xlane.f32.xlu0 %v320
    %v322 = vpop.xlane.xlu0 %321
    %v327 = vlaneseq
    %v328 = vand.u32 %v327, 127
    %v329 = vlaneseq
    %v330 = vshrl.u32 %v329, 7
    %v331 = vsub.s32 %v328, %v330
    %v332 = vrot.slane %v313, %v331
    %v333 = vadd.s32 %v328, 4294967288
    %v334 = vlaneseq
    %v335 = vshrl.u32 %v334, 7
    %v336 = vsub.s32 %v333, %v335
    %v337 = vrot.slane %v316, %v336
    %vm338 = vcmask 130112
    %v339 = vsel %vm338, %v337, %v332
    %v340 = vlaneseq
    %v341 = vshrl.u32 %v340, 7
    %v342 = vsub.s32 %v328, %v341
    %v343 = vrot.slane %v319, %v342
    %v344 = vlaneseq
    %v345 = vshrl.u32 %v344, 7
    %v346 = vsub.s32 %v333, %v345
    %v347 = vrot.slane %v322, %v346
    %v348 = vsel %vm338, %v347, %v343
    %vm349 = vcmask 1041409
    %v350 = vsel %vm349, %v348, %v339
    %vm352 = vcmask 123904
    %v353 = vsel %vm352, %v350, -inf
    %354 = vmax.xlane.f32.xlu0 %v353
    %v355 = vpop.xlane.xlu0 %354
    %v357 = vlaneseq
    %v358 = vshrl.u32 %v357, 7
    %v359 = vsub.s32 0, %v358
    %v360 = vrot.slane %v355, %v359
    %v361 = vlaneseq
    %v362 = vshrl.u32 %v361, 7
    %v363 = vsub.s32 1, %v362
    %v364 = vrot.slane %v355, %v363
    %v367 = vsub.f32 %v313, %v360
    %v368 = vsub.f32 %v316, %v360
    %v369 = vsub.f32 %v319, %v364
    %v370 = vsub.f32 %v322, %v364
    %v371 = vmul.f32 %v367, 1.442695
    %v372 = vpow.pop %v371
    %v373 = vmul.f32 %v368, 1.442695
    %v374 = vpow.pop %v373
    %v375 = vmul.f32 %v369, 1.442695
    %v376 = vpow.pop %v375
    %v377 = vmul.f32 %v370, 1.442695
    %v378 = vpow.pop %v377
    %383 = vset.pattern.permute.xlu0 0
    %384 = vperm.xlu0 %383, %v372
    %v385 = vpop.permute.xlu0 %384
    %386 = vset.pattern.permute.xlu0 0
    %387 = vperm.xlu0 %386, %v374
    %v388 = vpop.permute.xlu0 %387
    %389 = vset.pattern.permute.xlu0 0
    %390 = vperm.xlu0 %389, %v376
    %v391 = vpop.permute.xlu0 %390
    %392 = vset.pattern.permute.xlu0 0
    %393 = vperm.xlu0 %392, %v378
    %v394 = vpop.permute.xlu0 %393
    %v395 = vlaneseq
    %v396 = vshrl.u32 %v395, 7
    %v397 = vsub.s32 %v328, %v396
    %v398 = vrot.slane %v385, %v397
    %v399 = vlaneseq
    %v400 = vshrl.u32 %v399, 7
    %v401 = vsub.s32 %v333, %v400
    %v402 = vrot.slane %v388, %v401
    %v403 = vsel %vm338, %v402, %v398
    %v404 = vlaneseq
    %v405 = vshrl.u32 %v404, 7
    %v406 = vsub.s32 %v328, %v405
    %v407 = vrot.slane %v391, %v406
    %v408 = vlaneseq
    %v409 = vshrl.u32 %v408, 7
    %v410 = vsub.s32 %v333, %v409
    %v411 = vrot.slane %v394, %v410
    %v412 = vsel %vm338, %v411, %v407
    %v413 = vsel %vm349, %v412, %v403
    %v415 = vsel %vm352, %v413, 0.0
    %416 = vadd.xlane.f32.xlu0 %v415
    %v417 = vpop.xlane.xlu0 %416
    %v418 = vrcp.pop %v417
    %v420 = vlaneseq
    %v421 = vshrl.u32 %v420, 7
    %v422 = vsub.s32 0, %v421
    %v423 = vrot.slane %v418, %v422
    %v424 = vlaneseq
    %v425 = vshrl.u32 %v424, 7
    %v426 = vsub.s32 1, %v425
    %v427 = vrot.slane %v418, %v426
    %v430 = vmul.f32 %v372, %v423
    %v431 = vmul.f32 %v374, %v423
    %v432 = vmul.f32 %v376, %v427
    %v433 = vmul.f32 %v378, %v427
    %436 = vset.pattern.permute.xlu0 0
    %437 = vperm.xlu0 %436, %v430
    %v438 = vpop.permute.xlu0 %437
    %439 = vset.pattern.permute.xlu0 0
    %440 = vperm.xlu0 %439, %v431
    %v441 = vpop.permute.xlu0 %440
    %v442 = vlaneseq
    %v443 = vshrl.u32 %v442, 7
    %v444 = vsub.s32 %v328, %v443
    %v445 = vrot.slane %v438, %v444
    %v446 = vlaneseq
    %v447 = vshrl.u32 %v446, 7
    %v448 = vsub.s32 %v333, %v447
    %v449 = vrot.slane %v441, %v448
    %v450 = vsel %vm338, %v449, %v445
    %vm451 = vcmask 130048
    %v452 = vsel %vm451, %v450, 0
    %454 = vmatprep.subr.mxu0 0.0
    %455 = vmatpush1.msra.mxu0 %v68
    %456 = vmatprep.subr.mxu0 0.0
    %457 = vmatpush1.msra.mxu0 %v69
    %458 = vmatprep.subr.mxu0 0.0
    %459 = vmatpush1.msra.mxu0 0.0
    %460 = vmatprep.subr.mxu0 0.0
    %461 = vmatpush1.msra.mxu0 0.0
    %462 = vmatprep.subr.mxu0 0.0
    %463 = vmatpush1.msra.mxu0 0.0
    %464 = vmatprep.subr.mxu0 0.0
    %465 = vmatpush1.msra.mxu0 0.0
    %466 = vmatprep.subr.mxu0 0.0
    %467 = vmatpush1.msra.mxu0 0.0
    %468 = vmatprep.subr.mxu0 0.0
    %469 = vmatpush1.msra.mxu0 0.0
    %470 = vmatprep.subr.mxu0 0.0
    %471 = vmatpush1.msra.mxu0 0.0
    %472 = vmatprep.subr.mxu0 0.0
    %473 = vmatpush1.msra.mxu0 0.0
    %474 = vmatprep.subr.mxu0 0.0
    %475 = vmatpush1.msra.mxu0 0.0
    %476 = vmatprep.subr.mxu0 0.0
    %477 = vmatpush1.msra.mxu0 0.0
    %478 = vmatprep.subr.mxu0 0.0
    %479 = vmatpush1.msra.mxu0 0.0
    %480 = vmatprep.subr.mxu0 0.0
    %481 = vmatpush1.msra.mxu0 0.0
    %482 = vmatprep.subr.mxu0 0.0
    %483 = vmatpush1.msra.mxu0 0.0
    %484 = vmatprep.subr.mxu0 0.0
    %485 = vmatpush1.msra.mxu0 0.0
    %486 = vmatprep.subr.mxu0 0.0
    %487 = vmatpush1.msra.mxu0 0.0
    %488 = vmatprep.subr.mxu0 0.0
    %489 = vmatpush1.msra.mxu0 0.0
    %490 = vmatprep.subr.mxu0 0.0
    %491 = vmatpush1.msra.mxu0 0.0
    %492 = vmatprep.subr.mxu0 0.0
    %493 = vmatpush1.msra.mxu0 0.0
    %494 = vmatprep.subr.mxu0 0.0
    %495 = vmatpush1.msra.mxu0 0.0
    %496 = vmatprep.subr.mxu0 0.0
    %497 = vmatpush1.msra.mxu0 0.0
    %498 = vmatprep.subr.mxu0 0.0
    %499 = vmatpush1.msra.mxu0 0.0
    %500 = vmatprep.subr.mxu0 0.0
    %501 = vmatpush1.msra.mxu0 0.0
    %502 = vmatprep.subr.mxu0 0.0
    %503 = vmatpush1.msra.mxu0 0.0
    %504 = vmatprep.subr.mxu0 0.0
    %505 = vmatpush1.msra.mxu0 0.0
    %506 = vmatprep.subr.mxu0 0.0
    %507 = vmatpush1.msra.mxu0 0.0
    %508 = vmatprep.subr.mxu0 0.0
    %509 = vmatpush1.msra.mxu0 0.0
    %510 = vmatprep.subr.mxu0 0.0
    %511 = vmatpush1.msra.mxu0 0.0
    %512 = vmatprep.subr.mxu0 0.0
    %513 = vmatpush1.msra.mxu0 0.0
    %514 = vmatprep.subr.mxu0 0.0
    %515 = vmatpush1.msra.mxu0 0.0
    %516 = vmatprep.subr.mxu0 0.0
    %517 = vmatpush1.msra.mxu0 0.0
    %518 = vmatprep.mubr.f32.mxu0 0.0
    %519 = vmatmul.mubr.f32.gmra.mrb[0].mxu0 %v452
    %v520 = vpop.f32.mrb[0].mxu0
    %v521 = vadd.f32 0.0, %v520
    %v522 = vpop.f32.mrb[0].mxu0
    %523 = vdwg.mxu0
    %526 = vset.pattern.permute.xlu0 0
    %527 = vperm.xlu0 %526, %v432
    %v528 = vpop.permute.xlu0 %527
    %529 = vset.pattern.permute.xlu0 0
    %530 = vperm.xlu0 %529, %v433
    %v531 = vpop.permute.xlu0 %530
    %v532 = vlaneseq
    %v533 = vshrl.u32 %v532, 7
    %v534 = vsub.s32 %v328, %v533
    %v535 = vrot.slane %v528, %v534
    %v536 = vlaneseq
    %v537 = vshrl.u32 %v536, 7
    %v538 = vsub.s32 %v333, %v537
    %v539 = vrot.slane %v531, %v538
    %v540 = vsel %vm338, %v539, %v535
    %v541 = vsel %vm451, %v540, 0
    %543 = vmatprep.subr.mxu0 0.0
    %544 = vmatpush1.msra.mxu0 %v70
    %545 = vmatprep.subr.mxu0 0.0
    %546 = vmatpush1.msra.mxu0 %v71
    %547 = vmatprep.subr.mxu0 0.0
    %548 = vmatpush1.msra.mxu0 0.0
    %549 = vmatprep.subr.mxu0 0.0
    %550 = vmatpush1.msra.mxu0 0.0
    %551 = vmatprep.subr.mxu0 0.0
    %552 = vmatpush1.msra.mxu0 0.0
    %553 = vmatprep.subr.mxu0 0.0
    %554 = vmatpush1.msra.mxu0 0.0
    %555 = vmatprep.subr.mxu0 0.0
    %556 = vmatpush1.msra.mxu0 0.0
    %557 = vmatprep.subr.mxu0 0.0
    %558 = vmatpush1.msra.mxu0 0.0
    %559 = vmatprep.subr.mxu0 0.0
    %560 = vmatpush1.msra.mxu0 0.0
    %561 = vmatprep.subr.mxu0 0.0
    %562 = vmatpush1.msra.mxu0 0.0
    %563 = vmatprep.subr.mxu0 0.0
    %564 = vmatpush1.msra.mxu0 0.0
    %565 = vmatprep.subr.mxu0 0.0
    %566 = vmatpush1.msra.mxu0 0.0
    %567 = vmatprep.subr.mxu0 0.0
    %568 = vmatpush1.msra.mxu0 0.0
    %569 = vmatprep.subr.mxu0 0.0
    %570 = vmatpush1.msra.mxu0 0.0
    %571 = vmatprep.subr.mxu0 0.0
    %572 = vmatpush1.msra.mxu0 0.0
    %573 = vmatprep.subr.mxu0 0.0
    %574 = vmatpush1.msra.mxu0 0.0
    %575 = vmatprep.subr.mxu0 0.0
    %576 = vmatpush1.msra.mxu0 0.0
    %577 = vmatprep.subr.mxu0 0.0
    %578 = vmatpush1.msra.mxu0 0.0
    %579 = vmatprep.subr.mxu0 0.0
    %580 = vmatpush1.msra.mxu0 0.0
    %581 = vmatprep.subr.mxu0 0.0
    %582 = vmatpush1.msra.mxu0 0.0
    %583 = vmatprep.subr.mxu0 0.0
    %584 = vmatpush1.msra.mxu0 0.0
    %585 = vmatprep.subr.mxu0 0.0
    %586 = vmatpush1.msra.mxu0 0.0
    %587 = vmatprep.subr.mxu0 0.0
    %588 = vmatpush1.msra.mxu0 0.0
    %589 = vmatprep.subr.mxu0 0.0
    %590 = vmatpush1.msra.mxu0 0.0
    %591 = vmatprep.subr.mxu0 0.0
    %592 = vmatpush1.msra.mxu0 0.0
    %593 = vmatprep.subr.mxu0 0.0
    %594 = vmatpush1.msra.mxu0 0.0
    %595 = vmatprep.subr.mxu0 0.0
    %596 = vmatpush1.msra.mxu0 0.0
    %597 = vmatprep.subr.mxu0 0.0
    %598 = vmatpush1.msra.mxu0 0.0
    %599 = vmatprep.subr.mxu0 0.0
    %600 = vmatpush1.msra.mxu0 0.0
    %601 = vmatprep.subr.mxu0 0.0
    %602 = vmatpush1.msra.mxu0 0.0
    %603 = vmatprep.subr.mxu0 0.0
    %604 = vmatpush1.msra.mxu0 0.0
    %605 = vmatprep.subr.mxu0 0.0
    %606 = vmatpush1.msra.mxu0 0.0
    %607 = vmatprep.mubr.f32.mxu0 0.0
    %608 = vmatmul.mubr.f32.gmra.mrb[0].mxu0 %v541
    %v609 = vpop.f32.mrb[0].mxu0
    %v610 = vadd.f32 0.0, %v609
    %v611 = vpop.f32.mrb[0].mxu0
    %612 = vdwg.mxu0
    %v615 = vrot.slane %v610, 7
    %v616 = vsel %vm349, %v615, %v521
    %vm618 = vcmask 254976
    %619 = vst.msk [vmem:[#allocation8] sm:$0x3] %vm618, %v616
    %v620 = vsel %vm349, %v540, %v450
    %622 = vst.msk [vmem:[#allocation9] sm:$0x3] %vm352, %v620
    // Predicated region
    $region38: #{tpu_custom_call.1} parent=1 // pred_check
      _
    $region39: #{tpu_custom_call.1} parent=1 // pred_check_branch
      %624 = sbr.rel (0) target = $region41
    $region40: #{tpu_custom_call.1} parent=1 // pred_region
      %s626 = ssub.s32 32, 32
      %627 = vsyncadd [#allocation4], %s626
      %s629 = sshll.u32 [#allocation8], 4
      %s630 = int_to_ptr.vmem [resolvable:$true] %s629
      %632 = dma.vmem_to_hbm [thread:$0]  %s630, 32, %s6, [#allocation4]
    $region41: #{tpu_custom_call.1} parent=1 // pred_fallthru
      _
    // Predicated region
    $region42: #{tpu_custom_call.1} parent=1 // pred_check
      _
    $region43: #{tpu_custom_call.1} parent=1 // pred_check_branch
      %634 = sbr.rel (0) target = $region45
    $region44: #{tpu_custom_call.1} parent=1 // pred_region
      %s636 = ssub.s32 32, 32
      %637 = vsyncadd [#allocation10], %s636
      %s639 = sshll.u32 [#allocation9], 4
      %s640 = int_to_ptr.vmem [resolvable:$true] %s639
      %642 = dma.vmem_to_hbm [thread:$0]  %s640, 32, %s7, [#allocation10]
    $region45: #{tpu_custom_call.1} parent=1 // pred_fallthru
      _
    // Predicated region
    $region46: #{tpu_custom_call.1} parent=1 // pred_check
      _
    $region47: #{tpu_custom_call.1} parent=1 // pred_check_branch
      %644 = sbr.rel (0) target = $region49
    $region48: #{tpu_custom_call.1} parent=1 // pred_region
      %645 = dma.done [#allocation4], 32
    $region49: #{tpu_custom_call.1} parent=1 // pred_fallthru
      _
    // Predicated region
    $region50: #{tpu_custom_call.1} parent=1 // pred_check
      _
    $region51: #{tpu_custom_call.1} parent=1 // pred_check_branch
      %647 = sbr.rel (0) target = $region53
    $region52: #{tpu_custom_call.1} parent=1 // pred_region
      %648 = dma.done [#allocation10], 32
    $region53: #{tpu_custom_call.1} parent=1 // pred_fallthru
      _
    %649 = vsyncpa [#allocation3], 1
    %650 = vsyncpa [#allocation6], 1
    %651 = vsyncpa [#allocation4], 1
    %652 = vsyncpa [#allocation10], 1

</llo_original>
